<compile_context>
chip_gen: v6e
topology: v6e:2x2x1
jax: 0.10.0
libtpu: 0.0.40
codegen_flags: <defaults>
</compile_context>

<pallas_src>
import functools
import math

import jax
import jax.numpy as jnp
from jax.experimental import pallas as pl
from jax.experimental.pallas import tpu as pltpu

_VMEM = pltpu.MemorySpace.VMEM


def _vspecs(n):
    return [pl.BlockSpec(memory_space=_VMEM) for _ in range(n)]


def _whole_array_call(kernel, out_shapes, *args):
    """Single-invocation pallas_call: every operand is a whole array in VMEM."""
    multi = isinstance(out_shapes, (tuple, list))
    out_specs = tuple(_vspecs(len(out_shapes))) if multi else \
        pl.BlockSpec(memory_space=_VMEM)
    return pl.pallas_call(
        kernel,
        out_shape=out_shapes,
        in_specs=_vspecs(len(args)),
        out_specs=out_specs,
    )(*args)


# ----------------------------------------------------------------------------
# Pallas kernels
# ----------------------------------------------------------------------------
def _gemm_affine_kernel(a_ref, b_ref, s_ref, t_ref, o_ref, *, relu):
    # (M,K)bf16 @ (K,N)bf16 -> f32, fused y = acc*scale + shift, optional ReLU
    acc = jnp.dot(a_ref[...], b_ref[...], preferred_element_type=jnp.float32)
    y = acc * s_ref[...] + t_ref[...]
    if relu:
        y = jnp.maximum(y, 0.0)
    o_ref[...] = y


def _gemm_affine_res_kernel(a_ref, b_ref, s_ref, t_ref, r_ref, o_ref, *, relu):
    # same as above plus fused residual add
    acc = jnp.dot(a_ref[...], b_ref[...], preferred_element_type=jnp.float32)
    y = acc * s_ref[...] + t_ref[...] + r_ref[...]
    if relu:
        y = jnp.maximum(y, 0.0)
    o_ref[...] = y


def _add_kernel(a_ref, b_ref, o_ref):
    o_ref[...] = a_ref[...] + b_ref[...]


def _dual_add_kernel(u_ref, a_ref, b_ref, o1_ref, o2_ref):
    u = u_ref[...]
    o1_ref[...] = u + a_ref[...]
    o2_ref[...] = u + b_ref[...]


def _max4_kernel(a_ref, b_ref, c_ref, d_ref, o_ref):
    o_ref[...] = jnp.maximum(jnp.maximum(a_ref[...], b_ref[...]),
                             jnp.maximum(c_ref[...], d_ref[...]))


def _spin_graph_kernel(xst_ref, xp_ref, w1_ref, b1_ref, w2_ref, o_ref):
    # whole graph-reasoning GEMM chain in one kernel (tiny matrices)
    xst = xst_ref[...]                                              # (S, L)
    xp = xp_ref[...]                                                # (L, Nn)
    z = jnp.dot(xst, xp, preferred_element_type=jnp.float32)        # (S, Nn)
    h = jnp.dot(z, w1_ref[...], preferred_element_type=jnp.float32) + b1_ref[...]
    h = jnp.maximum(h + z, 0.0)
    h = jnp.dot(w2_ref[...], h, preferred_element_type=jnp.float32)  # (S, Nn)
    o_ref[...] = jnp.dot(xp, h.T, preferred_element_type=jnp.float32)  # (L, S)


# ----------------------------------------------------------------------------
# Fused conv wrappers (im2col on host, GEMM + epilogue in Pallas)
# ----------------------------------------------------------------------------
def _im2col(x, kh, kw, stride, padding):
    if padding:
        x = jnp.pad(x, ((0, 0), (padding, padding), (padding, padding), (0, 0)))
    N, H, W, C = x.shape
    Ho = (H - kh) // stride + 1
    Wo = (W - kw) // stride + 1
    if kh == 1 and kw == 1 and stride == 1:
        return x.reshape(N * Ho * Wo, C), (N, Ho, Wo)
    cols = []
    for i in range(kh):
        for j in range(kw):
            cols.append(x[:, i:i + stride * Ho:stride,
                          j:j + stride * Wo:stride, :])
    patches = jnp.stack(cols, axis=3)                  # (N,Ho,Wo,kh*kw,C)
    return patches.reshape(N * Ho * Wo, kh * kw * C), (N, Ho, Wo)


@functools.partial(jax.jit,
                   static_argnames=("kh", "kw", "stride", "padding", "relu"))
def _conv_call(x, w, scale, shift, *, kh, kw, stride, padding, relu):
    patches, (N, Ho, Wo) = _im2col(x, kh, kw, stride, padding)
    cout = w.shape[1]
    out = _whole_array_call(
        functools.partial(_gemm_affine_kernel, relu=relu),
        jax.ShapeDtypeStruct((patches.shape[0], cout), jnp.float32),
        patches.astype(jnp.bfloat16), w,
        scale.reshape(1, cout), shift.reshape(1, cout))
    return out.reshape(N, Ho, Wo, cout)


@functools.partial(jax.jit,
                   static_argnames=("kh", "kw", "stride", "padding", "relu"))
def _conv_res_call(x, w, scale, shift, res, *, kh, kw, stride, padding, relu):
    patches, (N, Ho, Wo) = _im2col(x, kh, kw, stride, padding)
    cout = w.shape[1]
    out = _whole_array_call(
        functools.partial(_gemm_affine_res_kernel, relu=relu),
        jax.ShapeDtypeStruct((patches.shape[0], cout), jnp.float32),
        patches.astype(jnp.bfloat16), w,
        scale.reshape(1, cout), shift.reshape(1, cout),
        res.reshape(N * Ho * Wo, cout).astype(jnp.float32))
    return out.reshape(N, Ho, Wo, cout)


def conv_forward(x, p, relu=False, residual=None, stride=1, padding=0):
    if residual is None:
        return _conv_call(x, p['w'], p['scale'], p['shift'],
                          kh=p['kh'], kw=p['kw'], stride=stride,
                          padding=padding, relu=relu)
    return _conv_res_call(x, p['w'], p['scale'], p['shift'], residual,
                          kh=p['kh'], kw=p['kw'], stride=stride,
                          padding=padding, relu=relu)


def deconv_forward(x, p, relu=False, stride=2, padding=0, output_padding=0):
    """ConvTranspose2d = zero-dilate + pad + stride-1 conv (weights already
    converted to the equivalent forward-conv kernel at parameter-build time)."""
    kh, kw = p['kh'], p['kw']
    N, H, W, C = x.shape
    if stride > 1:
        xd = jnp.zeros((N, (H - 1) * stride + 1, (W - 1) * stride + 1, C),
                       x.dtype)
        xd = xd.at[:, ::stride, ::stride, :].set(x)
    else:
        xd = x
    pt = kh - 1 - padding
    pb = kh - 1 - padding + output_padding
    plf = kw - 1 - padding
    prt = kw - 1 - padding + output_padding
    xp_ = jnp.pad(xd, ((0, 0), (pt, pb), (plf, prt), (0, 0)))
    return conv_forward(xp_, p, relu=relu, stride=1, padding=0)


# ----------------------------------------------------------------------------
# Elementwise fused ops
# ----------------------------------------------------------------------------
@jax.jit
def pallas_add(a, b):
    return _whole_array_call(_add_kernel,
                             jax.ShapeDtypeStruct(a.shape, jnp.float32),
                             a.astype(jnp.float32), b.astype(jnp.float32))


@jax.jit
def pallas_dual_add(u, a, b):
    sds = jax.ShapeDtypeStruct(u.shape, jnp.float32)
    return _whole_array_call(_dual_add_kernel, (sds, sds), u, a, b)


@jax.jit
def pallas_maxpool2x2_ceil(x):
    N, H, W, C = x.shape
    Hp = -(-H // 2) * 2
    Wp = -(-W // 2) * 2
    if (Hp, Wp) != (H, W):
        x = jnp.pad(x, ((0, 0), (0, Hp - H), (0, Wp - W), (0, 0)),
                    constant_values=-jnp.inf)
    a = x[:, 0::2, 0::2, :]
    b = x[:, 0::2, 1::2, :]
    c = x[:, 1::2, 0::2, :]
    d = x[:, 1::2, 1::2, :]
    return _whole_array_call(_max4_kernel,
                             jax.ShapeDtypeStruct(a.shape, x.dtype), a, b, c, d)


@jax.jit
def _spin_graph_call(xs_t, xp, w1, b1, w2):
    L = xp.shape[0]
    num_s = xs_t.shape[0]
    return _whole_array_call(_spin_graph_kernel,
                             jax.ShapeDtypeStruct((L, num_s), jnp.float32),
                             xs_t, xp, w1, b1, w2)


def upsample2x_nearest(x):
    return jnp.repeat(jnp.repeat(x, 2, axis=1), 2, axis=2)


# ----------------------------------------------------------------------------
# Deterministic parameter construction (shapes follow the PyTorch __init__);
# BatchNorm is inference-mode and folded (with the conv bias) into per-channel
# scale/shift consumed by the GEMM epilogue.
# ----------------------------------------------------------------------------
class ParamGen:
    def __init__(self, seed):
        self._key = jax.random.PRNGKey(seed)

    def next(self):
        self._key, k = jax.random.split(self._key)
        return k

    def _bn_raw(self, c, eps):
        gamma = 1.0 + 0.02 * jax.random.normal(self.next(), (c,), jnp.float32)
        beta = 0.02 * jax.random.normal(self.next(), (c,), jnp.float32)
        mean = 0.05 * jax.random.normal(self.next(), (c,), jnp.float32)
        var = 1.0 + 0.1 * jnp.abs(
            jax.random.normal(self.next(), (c,), jnp.float32))
        scale = gamma / jnp.sqrt(var + eps)
        shift = beta - mean * scale
        return scale, shift

    def _pack(self, w_khkwcico, cout, bias, bn, bn_eps, kh, kw):
        b = (0.01 * jax.random.normal(self.next(), (cout,), jnp.float32)
             if bias else jnp.zeros((cout,), jnp.float32))
        if bn:
            s, t = self._bn_raw(cout, bn_eps)
            scale, shift = s, t + s * b
        else:
            scale, shift = jnp.ones((cout,), jnp.float32), b
        return {'w': w_khkwcico.reshape(-1, cout).astype(jnp.bfloat16),
                'scale': scale, 'shift': shift, 'kh': kh, 'kw': kw}

    def conv(self, cin, cout, kh, kw, bias=True, bn=False, bn_eps=1e-5):
        fan = cin * kh * kw
        w = (0.5 * math.sqrt(2.0 / fan)) * jax.random.normal(
            self.next(), (kh, kw, cin, cout), jnp.float32)
        return self._pack(w, cout, bias, bn, bn_eps, kh, kw)

    def deconv(self, cin, cout, kh, kw, bias=True, bn=False, bn_eps=1e-5):
        # PyTorch ConvTranspose2d weight (cin,cout,kh,kw); the equivalent
        # forward conv uses the 180-deg spatially flipped, (cin,cout)-swapped
        # kernel (so real checkpoints would load correctly).
        fan = cin * kh * kw
        wt = (0.5 * math.sqrt(2.0 / fan)) * jax.random.normal(
            self.next(), (cin, cout, kh, kw), jnp.float32)
        w_eq = jnp.transpose(wt[:, :, ::-1, ::-1], (2, 3, 0, 1))
        return self._pack(w_eq, cout, bias, bn, bn_eps, kh, kw)


# ----------------------------------------------------------------------------
# Network building blocks
# ----------------------------------------------------------------------------
def make_basic_block(pg, inplanes, planes, stride=1, padding=1,
                     downsample=False):
    return {
        'conv1': pg.conv(inplanes, planes, 3, 3, bias=False, bn=True),
        'conv2': pg.conv(planes, planes, 3, 3, bias=False, bn=True),
        'downsample': (pg.conv(inplanes, planes, 1, 1, bias=True)
                       if downsample else None),
        'stride': stride, 'padding': padding,
    }


def basic_block_forward(x, blk):
    s, p = blk['stride'], blk['padding']
    out = conv_forward(x, blk['conv1'], relu=True, stride=s, padding=p)
    if blk['downsample'] is not None:
        residual = conv_forward(x, blk['downsample'], stride=s)
    else:
        residual = x
    # conv2 + bn2 + residual add + ReLU fused in a single GEMM epilogue.
    # NOTE: this module's BasicResnetBlock applies `stride` to conv2 as well.
    return conv_forward(out, blk['conv2'], relu=True, residual=residual,
                        stride=s, padding=p)


def make_residual_layer(pg, state, planes, blocks, stride=1):
    downsample = (stride != 1 or state['inplanes'] != planes)
    layers = [make_basic_block(pg, state['inplanes'], planes, stride, 1,
                               downsample)]
    state['inplanes'] = planes
    for _ in range(1, blocks):
        layers.append(make_basic_block(pg, planes, planes))
    return layers


def run_residual_layer(x, layers):
    for blk in layers:
        x = basic_block_forward(x, blk)
    return x


def make_residual1(pg, num_blocks, planes):
    return [make_basic_block(pg, planes, planes) for _ in range(num_blocks)]


def make_hourglass(pg, num_blocks, planes, depth):
    hg = []
    for i in range(depth):
        res = [make_residual1(pg, num_blocks, planes) for _ in range(4)]
        if i == 0:
            res.append(make_residual1(pg, num_blocks, planes))
            res.append(make_residual1(pg, num_blocks, planes))
        hg.append(res)
    return hg


def hourglass_forward(hg, n, x):
    rows, cols = x.shape[1], x.shape[2]
    up1 = run_residual_layer(x, hg[n - 1][0])
    low1 = pallas_maxpool2x2_ceil(x)
    low1 = run_residual_layer(low1, hg[n - 1][1])
    if n > 1:
        low2_1, low2_2 = hourglass_forward(hg, n - 1, low1)
    else:
        low2_1 = run_residual_layer(low1, hg[0][4])
        low2_2 = run_residual_layer(low1, hg[0][5])
    low3_1 = run_residual_layer(low2_1, hg[n - 1][2])
    low3_2 = run_residual_layer(low2_2, hg[n - 1][3])
    up2_1 = upsample2x_nearest(low3_1)[:, :rows, :cols, :]
    up2_2 = upsample2x_nearest(low3_2)[:, :rows, :cols, :]
    return pallas_dual_add(up1, up2_1, up2_2)


def make_decoder(pg, in_ch, n_filters):
    mid = in_ch // 4
    return {
        'conv1': pg.conv(in_ch, mid, 1, 1, bias=True, bn=True),
        'deconv2': pg.deconv(mid, mid, 3, 3, bias=True, bn=True),
        'conv3': pg.conv(mid, n_filters, 1, 1, bias=True, bn=True),
    }


def decoder_forward(x, p):
    x = conv_forward(x, p['conv1'], relu=True)
    x = deconv_forward(x, p['deconv2'], relu=True, stride=2, padding=1,
                       output_padding=1)
    x = conv_forward(x, p['conv3'], relu=True)
    return x


def make_spin(pg, planes, ratio):
    # TODO(synk): spin() (SPIN dual-space graph reasoning) source was not
    # provided with the module; implemented as a GloRe-style global reasoning
    # unit that preserves (N,H,W,planes) so the pyramid composition matches.
    num_mid = planes // ratio
    num_s, num_n = 2 * num_mid, num_mid
    return {
        'conv_state': pg.conv(planes, num_s, 1, 1, bias=True),
        'conv_proj': pg.conv(planes, num_n, 1, 1, bias=True),
        'gcn_w1': 0.1 * jax.random.normal(pg.next(), (num_n, num_n),
                                          jnp.float32),
        'gcn_b1': 0.01 * jax.random.normal(pg.next(), (1, num_n), jnp.float32),
        'gcn_w2': 0.1 * jax.random.normal(pg.next(), (num_s, num_s),
                                          jnp.float32),
        'conv_extend': pg.conv(num_s, planes, 1, 1, bias=False, bn=True,
                               bn_eps=1e-4),
        'num_s': num_s, 'num_n': num_n,
    }


def spin_forward(x, p):
    N, H, W, _ = x.shape
    num_s, num_n = p['num_s'], p['num_n']
    xs = conv_forward(x, p['conv_state'])           # (N,H,W,num_s)
    xpj = conv_forward(x, p['conv_proj'])           # (N,H,W,num_n)
    L = H * W
    states = []
    for b in range(N):
        xs_t = jnp.swapaxes(xs[b].reshape(L, num_s), 0, 1)   # (num_s, L)
        xp_b = xpj[b].reshape(L, num_n)
        states.append(_spin_graph_call(xs_t, xp_b, p['gcn_w1'], p['gcn_b1'],
                                       p['gcn_w2']))
    x_state = jnp.stack(states, 0).reshape(N, H, W, num_s)
    # 1x1 extend conv + blocker BN + residual add fused into the GEMM epilogue
    return conv_forward(x_state, p['conv_extend'], relu=False, residual=x)


# ----------------------------------------------------------------------------
# Full model
# ----------------------------------------------------------------------------
def make_model(pg, task1=2, task2=37, in_ch=3, num_stacks=2, num_blocks=1,
               hg_num_blocks=3, depth=3):
    num_feats = 128
    state = {'inplanes': 64}
    m = {'cfg': dict(task1=task1, task2=task2, num_stacks=num_stacks,
                     depth=depth)}
    m['conv1'] = pg.conv(in_ch, 64, 7, 7, bias=True, bn=True)   # conv1 + bn1
    m['layer1'] = make_residual_layer(pg, state, 64, 1)
    m['layer2'] = make_residual_layer(pg, state, 64, num_blocks)
    m['layer3'] = make_residual_layer(pg, state, num_feats, num_blocks)
    ch = num_feats
    for k in ('hg', 'res_1', 'res_2', 'fc_1', 'fc_2', 'score_1', 'score_2',
              '_fc_1', '_fc_2', '_score_1', '_score_2'):
        m[k] = []
    for i in range(num_stacks):
        m['hg'].append(make_hourglass(pg, hg_num_blocks, num_feats, depth))
        m['res_1'].append(make_residual_layer(pg, state, num_feats,
                                              hg_num_blocks))
        m['res_2'].append(make_residual_layer(pg, state, num_feats,
                                              hg_num_blocks))
        m['fc_1'].append(pg.conv(ch, ch, 1, 1, bias=True, bn=True))
        m['fc_2'].append(pg.conv(ch, ch, 1, 1, bias=True, bn=True))
        m['score_1'].append(pg.conv(ch, task1, 1, 1, bias=True))
        m['score_2'].append(pg.conv(ch, task2, 1, 1, bias=True))
        if i < num_stacks - 1:
            m['_fc_1'].append(pg.conv(ch, ch, 1, 1, bias=True))
            m['_fc_2'].append(pg.conv(ch, ch, 1, 1, bias=True))
            m['_score_1'].append(pg.conv(task1, ch, 1, 1, bias=True))
            m['_score_2'].append(pg.conv(task2, ch, 1, 1, bias=True))
    inplanes = state['inplanes']           # 128 at this point (matches PyTorch)
    m['decoder1'] = make_decoder(pg, num_feats, inplanes)
    m['decoder1_score'] = pg.conv(inplanes, task1, 1, 1, bias=True)
    m['finaldeconv1'] = pg.deconv(inplanes, 32, 3, 3, bias=True)
    m['finalconv2'] = pg.conv(32, 32, 3, 3, bias=True)
    m['finalconv3'] = pg.conv(32, task1, 2, 2, bias=True)
    m['angle_decoder1'] = make_decoder(pg, num_feats, inplanes)
    m['angle_decoder1_score'] = pg.conv(inplanes, task2, 1, 1, bias=True)
    m['angle_finaldeconv1'] = pg.deconv(inplanes, 32, 3, 3, bias=True)
    m['angle_finalconv2'] = pg.conv(32, 32, 3, 3, bias=True)
    m['angle_finalconv3'] = pg.conv(32, task2, 2, 2, bias=True)
    m['dgcn_seg1'] = make_spin(pg, 32, 2)
    m['dgcn_seg2'] = make_spin(pg, 32, 2)
    return m


def model_forward(m, x_nchw):
    cfg = m['cfg']
    rows, cols = x_nchw.shape[2], x_nchw.shape[3]
    x = jnp.transpose(x_nchw, (0, 2, 3, 1)).astype(jnp.float32)
    out_1, out_2 = [], []

    x = conv_forward(x, m['conv1'], relu=True, stride=2, padding=3)
    x = run_residual_layer(x, m['layer1'])
    x = pallas_maxpool2x2_ceil(x)
    x = run_residual_layer(x, m['layer2'])
    x = run_residual_layer(x, m['layer3'])

    r4, c4 = -(-rows // 4), -(-cols // 4)
    y1 = y2 = None
    for i in range(cfg['num_stacks']):
        y1, y2 = hourglass_forward(m['hg'][i], cfg['depth'], x)
        y1 = run_residual_layer(y1, m['res_1'][i])
        y2 = run_residual_layer(y2, m['res_2'][i])
        y1 = conv_forward(y1, m['fc_1'][i], relu=True)
        y2 = conv_forward(y2, m['fc_2'][i], relu=True)
        score1 = conv_forward(y1, m['score_1'][i])
        score2 = conv_forward(y2, m['score_2'][i])
        out_1.append(score1[:, :r4, :c4, :])
        out_2.append(score2[:, :r4, :c4, :])
        if i < cfg['num_stacks'] - 1:
            # x = x + _fc_1(y1) + _score_1(score1) + _fc_2(y2) + _score_2(score2)
            # each 1x1 conv carries the running sum as a fused residual.
            t = conv_forward(y1, m['_fc_1'][i], residual=x)
            t = conv_forward(score1, m['_score_1'][i], residual=t)
            t = conv_forward(y2, m['_fc_2'][i], residual=t)
            x = conv_forward(score2, m['_score_2'][i], residual=t)

    r2, c2 = -(-rows // 2), -(-cols // 2)

    # ---- segmentation head (SPIN pyramid) ----
    d1 = decoder_forward(y1, m['decoder1'])[:, :r2, :c2, :]
    out_1.append(conv_forward(d1, m['decoder1_score']))
    f2 = deconv_forward(d1, m['finaldeconv1'], relu=True, stride=2)  # relu fused
    spin257 = spin_forward(f2, m['dgcn_seg1'])
    f2_128 = pallas_maxpool2x2_ceil(f2)
    spin128 = spin_forward(f2_128, m['dgcn_seg2'])
    spin128_up = jax.image.resize(
        spin128, (spin257.shape[0], spin257.shape[1], spin257.shape[2],
                  spin257.shape[3]), method='bilinear')
    f2p = pallas_add(spin128_up, spin257)
    f4 = conv_forward(f2p, m['finalconv2'], relu=True)               # relu fused
    out_1.append(conv_forward(f4, m['finalconv3'], padding=1))

    # ---- angle head ----
    a_d1 = decoder_forward(y2, m['angle_decoder1'])[:, :r2, :c2, :]
    out_2.append(conv_forward(a_d1, m['angle_decoder1_score']))
    a_f2 = deconv_forward(a_d1, m['angle_finaldeconv1'], relu=True, stride=2)
    a_f4 = conv_forward(a_f2, m['angle_finalconv2'], relu=True)
    out_2.append(conv_forward(a_f4, m['angle_finalconv3'], padding=1))

    out_1 = [jnp.transpose(o, (0, 3, 1, 2)) for o in out_1]   # back to NCHW
    out_2 = [jnp.transpose(o, (0, 3, 1, 2)) for o in out_2]
    return out_1, out_2


# ----------------------------------------------------------------------------
if __name__ == "__main__":
    pg = ParamGen(1)
    model = make_model(pg)

    x = jax.random.normal(jax.random.PRNGKey(0), (1, 3, 32, 32), jnp.float32)

    out_1, out_2 = model_forward(model, x)
    for o in out_1 + out_2:
        jax.block_until_ready(o)

    # sanity on shapes (mirrors PyTorch NCHW outputs)
    assert out_1[0].shape == (1, 2, 8, 8)
    assert out_1[1].shape == (1, 2, 8, 8)
    assert out_1[2].shape == (1, 2, 16, 16)
    assert out_1[3].shape == (1, 2, 32, 32)
    assert out_2[0].shape == (1, 37, 8, 8)
    assert out_2[1].shape == (1, 37, 8, 8)
    assert out_2[2].shape == (1, 37, 16, 16)
    assert out_2[3].shape == (1, 37, 32, 32)

    print("KERNEL_OK")
</pallas_src>

<mosaic_0001>
module attributes {stable_mosaic.version = 11 : i64} {
  func.func @_gemm_affine_kernel(%arg0: memref<256x147xbf16, #tpu.memory_space<vmem>>, %arg1: memref<147x64xbf16, #tpu.memory_space<vmem>>, %arg2: memref<1x64xf32, #tpu.memory_space<vmem>>, %arg3: memref<1x64xf32, #tpu.memory_space<vmem>>, %arg4: memref<256x64xf32, #tpu.memory_space<vmem>>) attributes {dimension_semantics = [], scalar_prefetch = 0 : i64, scratch_operands = 0 : i64, tpu.core_type = #tpu.core_type<tc>} {
    %c0 = arith.constant 0 : index
    %c0_0 = arith.constant 0 : index
    %0 = vector.load %arg0[%c0, %c0_0] : memref<256x147xbf16, #tpu.memory_space<vmem>>, vector<256x147xbf16>
    %c0_1 = arith.constant 0 : index
    %c0_2 = arith.constant 0 : index
    %1 = vector.load %arg1[%c0_1, %c0_2] : memref<147x64xbf16, #tpu.memory_space<vmem>>, vector<147x64xbf16>
    %cst = arith.constant dense<0.000000e+00> : vector<256x64xf32>
    %2 = tpu.matmul %0, %1, %cst {dimension_numbers = #tpu.dot_dimension_numbers<[1], [0], [0], [1], [0, 0, 1, 1], [], []>} : vector<256x147xbf16>, vector<147x64xbf16>, vector<256x64xf32> -> vector<256x64xf32>
    %c0_3 = arith.constant 0 : index
    %c0_4 = arith.constant 0 : index
    %3 = vector.load %arg2[%c0_3, %c0_4] : memref<1x64xf32, #tpu.memory_space<vmem>>, vector<1x64xf32>
    %4 = vector.broadcast %3 : vector<1x64xf32> to vector<256x64xf32>
    %5 = arith.mulf %2, %4 : vector<256x64xf32>
    %c0_5 = arith.constant 0 : index
    %c0_6 = arith.constant 0 : index
    %6 = vector.load %arg3[%c0_5, %c0_6] : memref<1x64xf32, #tpu.memory_space<vmem>>, vector<1x64xf32>
    %7 = vector.broadcast %6 : vector<1x64xf32> to vector<256x64xf32>
    %8 = arith.addf %5, %7 : vector<256x64xf32>
    %cst_7 = arith.constant 0.000000e+00 : f32
    %9 = vector.broadcast %cst_7 : f32 to vector<256x64xf32>
    %10 = arith.maximumf %8, %9 : vector<256x64xf32>
    %c0_8 = arith.constant 0 : index
    %c0_9 = arith.constant 0 : index
    %11 = vector.load %arg4[%c0_8, %c0_9] : memref<256x64xf32, #tpu.memory_space<vmem>>, vector<256x64xf32>
    tpu.vector_store %arg4[%c0_8, %c0_9], %10 {strides = array<i32>} : memref<256x64xf32, #tpu.memory_space<vmem>>, vector<256x64xf32>,
    return
  }
}

</mosaic_0001>

<llo_original>
// kernel: _conv_call.1
$region0: #{_conv_call.1}
  #allocation0 [shape = 'u32[]', space=smem, size = 0x4, offset = 0x4, fixed_abs, tag = 'smem constant byte address 0x4 - core index']
  #allocation1 [shape = 'u32[144,128]{1,0:T(1,128)}', space=vmem, size = 0x12000, scoped, tag = 'internal scratch']
  %s0 = inlined_call_operand.vmem [shape: bf16[256,147], index: 0, kind: input, shape index: {}]
  %s1 = inlined_call_operand.vmem [shape: bf16[147,64], index: 1, kind: input, shape index: {}]
  %s2 = inlined_call_operand.vmem [shape: f32[1,64], index: 2, kind: input, shape index: {}]
  %s3 = inlined_call_operand.vmem [shape: f32[1,64], index: 3, kind: input, shape index: {}]
  %s4 = inlined_call_operand.hbm [shape: f32[256,64], index: 4, kind: output, shape index: {}]
  %s5 = sld [smem:[#allocation0]]
  $region26: #{_conv_call.1} parent=0
    _
  %s7 = ssub.s32 1, %s5
  %s8 = scalar_select 0, %s7, %s5
  $region1: #{_conv_call.1} parent=0
    #allocation2 [shape = 'u8[131072]{0}', space=vmem, size = 0x20000, scoped, tag = 'output window, operand 0, single buffered']
    #allocation3 [shape = 's32[1]{0}', space=sflag, size = 0x4, scoped, tag = 'scoped memory for _conv_call.1']
    %9 = vsyncpa [#allocation3], 0
    // Predicated region
    $region2: #{_conv_call.1} parent=1 // pred_check
      _
    $region3: #{_conv_call.1} parent=1 // pred_check_branch
      %11 = sbr.rel (0) target = $region5
    $region4: #{_conv_call.1} parent=1 // pred_region
      _
    $region5: #{_conv_call.1} parent=1 // pred_fallthru
      _
    // Predicated region
    $region6: #{_conv_call.1} parent=1 // pred_check
      _
    $region7: #{_conv_call.1} parent=1 // pred_check_branch
      %13 = sbr.rel (0) target = $region9
    $region8: #{_conv_call.1} parent=1 // pred_region
      _
    $region9: #{_conv_call.1} parent=1 // pred_fallthru
      _
    // Predicated region
    $region10: #{_conv_call.1} parent=1 // pred_check
      _
    $region11: #{_conv_call.1} parent=1 // pred_check_branch
      %15 = sbr.rel (0) target = $region13
    $region12: #{_conv_call.1} parent=1 // pred_region
      _
    $region13: #{_conv_call.1} parent=1 // pred_fallthru
      _
    // Predicated region
    $region14: #{_conv_call.1} parent=1 // pred_check
      _
    $region15: #{_conv_call.1} parent=1 // pred_check_branch
      %17 = sbr.rel (0) target = $region17
    $region16: #{_conv_call.1} parent=1 // pred_region
      _
    $region17: #{_conv_call.1} parent=1 // pred_fallthru
      _
    %v19 = vld [vmem:[%s0] sm:$0xff]
    %v20 = vld [vmem:[%s0 + $0x8] sm:$0xff]
    %v21 = vld [vmem:[%s0 + $0x10] sm:$0xff]
    %v22 = vld [vmem:[%s0 + $0x18] sm:$0xff]
    %v23 = vld [vmem:[%s0 + $0x20] sm:$0xff]
    %v24 = vld [vmem:[%s0 + $0x28] sm:$0xff]
    %v25 = vld [vmem:[%s0 + $0x30] sm:$0xff]
    %v26 = vld [vmem:[%s0 + $0x38] sm:$0xff]
    %v27 = vld [vmem:[%s0 + $0x40] sm:$0xff]
    %v28 = vld [vmem:[%s0 + $0x48] sm:$0xff]
    %v29 = vld [vmem:[%s0 + $0x50] sm:$0xff]
    %v30 = vld [vmem:[%s0 + $0x58] sm:$0xff]
    %v31 = vld [vmem:[%s0 + $0x60] sm:$0xff]
    %v32 = vld [vmem:[%s0 + $0x68] sm:$0xff]
    %v33 = vld [vmem:[%s0 + $0x70] sm:$0xff]
    %v34 = vld [vmem:[%s0 + $0x78] sm:$0xff]
    %v35 = vld [vmem:[%s0 + $0x80] sm:$0xff]
    %v36 = vld [vmem:[%s0 + $0x88] sm:$0xff]
    %v37 = vld [vmem:[%s0 + $0x90] sm:$0xff]
    %v38 = vld [vmem:[%s0 + $0x98] sm:$0xff]
    %v39 = vld [vmem:[%s0 + $0xa0] sm:$0xff]
    %v40 = vld [vmem:[%s0 + $0xa8] sm:$0xff]
    %v41 = vld [vmem:[%s0 + $0xb0] sm:$0xff]
    %v42 = vld [vmem:[%s0 + $0xb8] sm:$0xff]
    %v43 = vld [vmem:[%s0 + $0xc0] sm:$0xff]
    %v44 = vld [vmem:[%s0 + $0xc8] sm:$0xff]
    %v45 = vld [vmem:[%s0 + $0xd0] sm:$0xff]
    %v46 = vld [vmem:[%s0 + $0xd8] sm:$0xff]
    %v47 = vld [vmem:[%s0 + $0xe0] sm:$0xff]
    %v48 = vld [vmem:[%s0 + $0xe8] sm:$0xff]
    %v49 = vld [vmem:[%s0 + $0xf0] sm:$0xff]
    %v50 = vld [vmem:[%s0 + $0xf8] sm:$0xff]
    %v51 = vld [vmem:[%s1] sm:$0xf]
    %v52 = vld [vmem:[%s1 + $0x4] sm:$0xf]
    %v53 = vld [vmem:[%s1 + $0x8] sm:$0xf]
    %v54 = vld [vmem:[%s1 + $0xc] sm:$0xf]
    %v55 = vld [vmem:[%s1 + $0x10] sm:$0xf]
    %v56 = vld [vmem:[%s1 + $0x14] sm:$0xf]
    %v57 = vld [vmem:[%s1 + $0x18] sm:$0xf]
    %v58 = vld [vmem:[%s1 + $0x1c] sm:$0xf]
    %v59 = vld [vmem:[%s1 + $0x20] sm:$0xf]
    %v60 = vld [vmem:[%s1 + $0x24] sm:$0xf]
    %v61 = vld [vmem:[%s1 + $0x28] sm:$0xf]
    %v62 = vld [vmem:[%s1 + $0x2c] sm:$0xf]
    %v63 = vld [vmem:[%s1 + $0x30] sm:$0xf]
    %v64 = vld [vmem:[%s1 + $0x34] sm:$0xf]
    %v65 = vld [vmem:[%s1 + $0x38] sm:$0xf]
    %v66 = vld [vmem:[%s1 + $0x3c] sm:$0xf]
    %v67 = vld [vmem:[%s1 + $0x40] sm:$0xf]
    %v68 = vld [vmem:[%s1 + $0x44] sm:$0xf]
    %v69 = vld [vmem:[%s1 + $0x48] sm:$0x3]
    %v102 = vunpack.c.l.b16 %v19
    %v103 = vunpack.c.h.b16 %v19
    %v104 = vunpack.c.l.b16 %v20
    %v105 = vunpack.c.h.b16 %v20
    %v106 = vunpack.c.l.b16 %v21
    %v107 = vunpack.c.h.b16 %v21
    %v108 = vunpack.c.l.b16 %v22
    %v109 = vunpack.c.h.b16 %v22
    %v110 = vunpack.c.l.b16 %v23
    %v111 = vunpack.c.h.b16 %v23
    %v112 = vunpack.c.l.b16 %v24
    %v113 = vunpack.c.h.b16 %v24
    %v114 = vunpack.c.l.b16 %v25
    %v115 = vunpack.c.h.b16 %v25
    %v116 = vunpack.c.l.b16 %v26
    %v117 = vunpack.c.h.b16 %v26
    %v118 = vunpack.c.l.b16 %v27
    %v119 = vunpack.c.h.b16 %v27
    %v120 = vunpack.c.l.b16 %v28
    %v121 = vunpack.c.h.b16 %v28
    %v122 = vunpack.c.l.b16 %v29
    %v123 = vunpack.c.h.b16 %v29
    %v124 = vunpack.c.l.b16 %v30
    %v125 = vunpack.c.h.b16 %v30
    %v126 = vunpack.c.l.b16 %v31
    %v127 = vunpack.c.h.b16 %v31
    %v128 = vunpack.c.l.b16 %v32
    %v129 = vunpack.c.h.b16 %v32
    %v130 = vunpack.c.l.b16 %v33
    %v131 = vunpack.c.h.b16 %v33
    %v132 = vunpack.c.l.b16 %v34
    %v133 = vunpack.c.h.b16 %v34
    %v134 = vunpack.c.l.b16 %v35
    %v135 = vunpack.c.h.b16 %v35
    %v136 = vunpack.c.l.b16 %v36
    %v137 = vunpack.c.h.b16 %v36
    %v138 = vunpack.c.l.b16 %v37
    %v139 = vunpack.c.h.b16 %v37
    %v140 = vunpack.c.l.b16 %v38
    %v141 = vunpack.c.h.b16 %v38
    %v142 = vunpack.c.l.b16 %v39
    %v143 = vunpack.c.h.b16 %v39
    %v144 = vunpack.c.l.b16 %v40
    %v145 = vunpack.c.h.b16 %v40
    %v146 = vunpack.c.l.b16 %v41
    %v147 = vunpack.c.h.b16 %v41
    %v148 = vunpack.c.l.b16 %v42
    %v149 = vunpack.c.h.b16 %v42
    %v150 = vunpack.c.l.b16 %v43
    %v151 = vunpack.c.h.b16 %v43
    %v152 = vunpack.c.l.b16 %v44
    %v153 = vunpack.c.h.b16 %v44
    %v154 = vunpack.c.l.b16 %v45
    %v155 = vunpack.c.h.b16 %v45
    %v156 = vunpack.c.l.b16 %v46
    %v157 = vunpack.c.h.b16 %v46
    %v158 = vunpack.c.l.b16 %v47
    %v159 = vunpack.c.h.b16 %v47
    %v160 = vunpack.c.l.b16 %v48
    %v161 = vunpack.c.h.b16 %v48
    %v162 = vunpack.c.l.b16 %v49
    %v163 = vunpack.c.h.b16 %v49
    %v164 = vunpack.c.l.b16 %v50
    %v165 = vunpack.c.h.b16 %v50
    %v166 = vpack.c.b16 %v104, %v102
    %v167 = vpack.c.b16 %v105, %v103
    %v168 = vpack.c.b16 %v108, %v106
    %v169 = vpack.c.b16 %v109, %v107
    %v170 = vpack.c.b16 %v112, %v110
    %v171 = vpack.c.b16 %v113, %v111
    %v172 = vpack.c.b16 %v116, %v114
    %v173 = vpack.c.b16 %v117, %v115
    %v174 = vpack.c.b16 %v120, %v118
    %v175 = vpack.c.b16 %v121, %v119
    %v176 = vpack.c.b16 %v124, %v122
    %v177 = vpack.c.b16 %v125, %v123
    %v178 = vpack.c.b16 %v128, %v126
    %v179 = vpack.c.b16 %v129, %v127
    %v180 = vpack.c.b16 %v132, %v130
    %v181 = vpack.c.b16 %v133, %v131
    %v182 = vpack.c.b16 %v136, %v134
    %v183 = vpack.c.b16 %v137, %v135
    %v184 = vpack.c.b16 %v140, %v138
    %v185 = vpack.c.b16 %v141, %v139
    %v186 = vpack.c.b16 %v144, %v142
    %v187 = vpack.c.b16 %v145, %v143
    %v188 = vpack.c.b16 %v148, %v146
    %v189 = vpack.c.b16 %v149, %v147
    %v190 = vpack.c.b16 %v152, %v150
    %v191 = vpack.c.b16 %v153, %v151
    %v192 = vpack.c.b16 %v156, %v154
    %v193 = vpack.c.b16 %v157, %v155
    %v194 = vpack.c.b16 %v160, %v158
    %v195 = vpack.c.b16 %v161, %v159
    %v196 = vpack.c.b16 %v164, %v162
    %v197 = vpack.c.b16 %v165, %v163
    %v233 = vunpack.c.l.b16 %v51
    %v234 = vunpack.c.l.b16 %v52
    %v235 = vunpack.c.l.b16 %v53
    %v236 = vunpack.c.l.b16 %v54
    %v237 = vunpack.c.l.b16 %v55
    %v238 = vunpack.c.l.b16 %v56
    %v239 = vunpack.c.l.b16 %v57
    %v240 = vunpack.c.l.b16 %v58
    %v241 = vunpack.c.l.b16 %v59
    %v242 = vunpack.c.l.b16 %v60
    %v243 = vunpack.c.l.b16 %v61
    %v244 = vunpack.c.l.b16 %v62
    %v245 = vunpack.c.l.b16 %v63
    %v246 = vunpack.c.l.b16 %v64
    %v247 = vunpack.c.l.b16 %v65
    %v248 = vunpack.c.l.b16 %v66
    %v249 = vunpack.c.l.b16 %v67
    %v250 = vunpack.c.l.b16 %v68
    %v251 = vunpack.c.l.b16 %v69
    %v252 = vpack.c.b16 %v234, %v233
    %v253 = vpack.c.b16 %v236, %v235
    %v254 = vpack.c.b16 %v238, %v237
    %v255 = vpack.c.b16 %v240, %v239
    %v256 = vpack.c.b16 %v242, %v241
    %v257 = vpack.c.b16 %v244, %v243
    %v258 = vpack.c.b16 %v246, %v245
    %v259 = vpack.c.b16 %v248, %v247
    %v260 = vpack.c.b16 %v250, %v249
    %v261 = vpack.c.b16 %v251, %v251
    %vm271 = vcmask 154624
    %v273 = vsel %vm271, %v167, 0
    %v276 = vsel %vm271, %v169, 0
    %v279 = vsel %vm271, %v171, 0
    %v282 = vsel %vm271, %v173, 0
    %v285 = vsel %vm271, %v175, 0
    %v288 = vsel %vm271, %v177, 0
    %v291 = vsel %vm271, %v179, 0
    %v294 = vsel %vm271, %v181, 0
    %v297 = vsel %vm271, %v183, 0
    %v300 = vsel %vm271, %v185, 0
    %v303 = vsel %vm271, %v187, 0
    %v306 = vsel %vm271, %v189, 0
    %v309 = vsel %vm271, %v191, 0
    %v312 = vsel %vm271, %v193, 0
    %v315 = vsel %vm271, %v195, 0
    %v318 = vsel %vm271, %v197, 0
    %vm320 = vcmask 1040384
    %vm321 = vcmask 1041408
    %v322 = vsel %vm320, 4294967295, 65535
    %v323 = vsel %vm321, %v322, 0
    %v325 = vand.u32 %v261, %v323
    %327 = vmatprep.subr.bf16.mxu0 0
    %328 = vmatpush1.bf16.msra.mxu0 %v259
    %329 = vmatprep.subr.bf16.mxu0 0
    %330 = vmatpush1.bf16.msra.mxu0 %v258
    %331 = vmatprep.subr.bf16.mxu0 0
    %332 = vmatpush1.bf16.msra.mxu0 %v257
    %333 = vmatprep.subr.bf16.mxu0 0
    %334 = vmatpush1.bf16.msra.mxu0 %v256
    %335 = vmatprep.subr.bf16.mxu0 0
    %336 = vmatpush1.bf16.msra.mxu0 %v255
    %337 = vmatprep.subr.bf16.mxu0 0
    %338 = vmatpush1.bf16.msra.mxu0 %v254
    %339 = vmatprep.subr.bf16.mxu0 0
    %340 = vmatpush1.bf16.msra.mxu0 %v253
    %341 = vmatprep.subr.bf16.mxu0 0
    %342 = vmatpush1.bf16.msra.mxu0 %v252
    %343 = vmatprep.subr.bf16.mxu0 0
    %344 = vmatpush2.bf16.msra.mxu0 0
    %345 = vmatprep.subr.bf16.mxu0 0
    %346 = vmatpush2.bf16.msra.mxu0 0
    %347 = vmatprep.subr.bf16.mxu0 0
    %348 = vmatpush2.bf16.msra.mxu0 0
    %349 = vmatprep.subr.bf16.mxu0 0
    %350 = vmatpush2.bf16.msra.mxu0 0
    %351 = vmatprep.subr.bf16.mxu0 0
    %352 = vmatpush2.bf16.msra.mxu0 0
    %353 = vmatprep.subr.bf16.mxu0 0
    %354 = vmatpush2.bf16.msra.mxu0 0
    %355 = vmatprep.subr.bf16.mxu0 0
    %356 = vmatpush2.bf16.msra.mxu0 %v325
    %357 = vmatprep.subr.bf16.mxu0 0
    %358 = vmatpush2.bf16.msra.mxu0 %v260
    %359 = vmatprep.mubr.bf16.mxu0 %v273
    %360 = vmatmul.mubr.bf16.gmra.mxu0 %v166
    %v361 = vpop.f32.mrf.mxu0
    %v362 = vadd.f32 0.0, %v361
    %v363 = vpop.f32.mrf.mxu0
    %v364 = vpop.f32.mrf.mxu0
    %v365 = vadd.f32 0.0, %v364
    %v366 = vpop.f32.mrf.mxu0
    %367 = vmatprep.mubr.bf16.mxu0 %v276
    %368 = vmatmul.mubr.bf16.gmra.mxu0 %v168
    %v369 = vpop.f32.mrf.mxu0
    %v370 = vadd.f32 0.0, %v369
    %v371 = vpop.f32.mrf.mxu0
    %v372 = vpop.f32.mrf.mxu0
    %v373 = vadd.f32 0.0, %v372
    %v374 = vpop.f32.mrf.mxu0
    %375 = vmatprep.mubr.bf16.mxu0 %v279
    %376 = vmatmul.mubr.bf16.gmra.mxu0 %v170
    %v377 = vpop.f32.mrf.mxu0
    %v378 = vadd.f32 0.0, %v377
    %v379 = vpop.f32.mrf.mxu0
    %v380 = vpop.f32.mrf.mxu0
    %v381 = vadd.f32 0.0, %v380
    %v382 = vpop.f32.mrf.mxu0
    %383 = vmatprep.mubr.bf16.mxu0 %v282
    %384 = vmatmul.mubr.bf16.gmra.mxu0 %v172
    %v385 = vpop.f32.mrf.mxu0
    %v386 = vadd.f32 0.0, %v385
    %v387 = vpop.f32.mrf.mxu0
    %v388 = vpop.f32.mrf.mxu0
    %v389 = vadd.f32 0.0, %v388
    %v390 = vpop.f32.mrf.mxu0
    %391 = vmatprep.mubr.bf16.mxu0 %v285
    %392 = vmatmul.mubr.bf16.gmra.mxu0 %v174
    %v393 = vpop.f32.mrf.mxu0
    %v394 = vadd.f32 0.0, %v393
    %v395 = vpop.f32.mrf.mxu0
    %v396 = vpop.f32.mrf.mxu0
    %v397 = vadd.f32 0.0, %v396
    %v398 = vpop.f32.mrf.mxu0
    %399 = vmatprep.mubr.bf16.mxu0 %v288
    %400 = vmatmul.mubr.bf16.gmra.mxu0 %v176
    %v401 = vpop.f32.mrf.mxu0
    %v402 = vadd.f32 0.0, %v401
    %v403 = vpop.f32.mrf.mxu0
    %v404 = vpop.f32.mrf.mxu0
    %v405 = vadd.f32 0.0, %v404
    %v406 = vpop.f32.mrf.mxu0
    %407 = vmatprep.mubr.bf16.mxu0 %v291
    %408 = vmatmul.mubr.bf16.gmra.mxu0 %v178
    %v409 = vpop.f32.mrf.mxu0
    %v410 = vadd.f32 0.0, %v409
    %v411 = vpop.f32.mrf.mxu0
    %v412 = vpop.f32.mrf.mxu0
    %v413 = vadd.f32 0.0, %v412
    %v414 = vpop.f32.mrf.mxu0
    %415 = vmatprep.mubr.bf16.mxu0 %v294
    %416 = vmatmul.mubr.bf16.gmra.mxu0 %v180
    %v417 = vpop.f32.mrf.mxu0
    %v418 = vadd.f32 0.0, %v417
    %v419 = vpop.f32.mrf.mxu0
    %v420 = vpop.f32.mrf.mxu0
    %v421 = vadd.f32 0.0, %v420
    %v422 = vpop.f32.mrf.mxu0
    %423 = vmatprep.mubr.bf16.mxu0 %v297
    %424 = vmatmul.mubr.bf16.gmra.mxu0 %v182
    %v425 = vpop.f32.mrf.mxu0
    %v426 = vadd.f32 0.0, %v425
    %v427 = vpop.f32.mrf.mxu0
    %v428 = vpop.f32.mrf.mxu0
    %v429 = vadd.f32 0.0, %v428
    %v430 = vpop.f32.mrf.mxu0
    %431 = vmatprep.mubr.bf16.mxu0 %v300
    %432 = vmatmul.mubr.bf16.gmra.mxu0 %v184
    %v433 = vpop.f32.mrf.mxu0
    %v434 = vadd.f32 0.0, %v433
    %v435 = vpop.f32.mrf.mxu0
    %v436 = vpop.f32.mrf.mxu0
    %v437 = vadd.f32 0.0, %v436
    %v438 = vpop.f32.mrf.mxu0
    %439 = vmatprep.mubr.bf16.mxu0 %v303
    %440 = vmatmul.mubr.bf16.gmra.mxu0 %v186
    %v441 = vpop.f32.mrf.mxu0
    %v442 = vadd.f32 0.0, %v441
    %v443 = vpop.f32.mrf.mxu0
    %v444 = vpop.f32.mrf.mxu0
    %v445 = vadd.f32 0.0, %v444
    %v446 = vpop.f32.mrf.mxu0
    %447 = vmatprep.mubr.bf16.mxu0 %v306
    %448 = vmatmul.mubr.bf16.gmra.mxu0 %v188
    %v449 = vpop.f32.mrf.mxu0
    %v450 = vadd.f32 0.0, %v449
    %v451 = vpop.f32.mrf.mxu0
    %v452 = vpop.f32.mrf.mxu0
    %v453 = vadd.f32 0.0, %v452
    %v454 = vpop.f32.mrf.mxu0
    %455 = vmatprep.mubr.bf16.mxu0 %v309
    %456 = vmatmul.mubr.bf16.gmra.mxu0 %v190
    %v457 = vpop.f32.mrf.mxu0
    %v458 = vadd.f32 0.0, %v457
    %v459 = vpop.f32.mrf.mxu0
    %v460 = vpop.f32.mrf.mxu0
    %v461 = vadd.f32 0.0, %v460
    %v462 = vpop.f32.mrf.mxu0
    %463 = vmatprep.mubr.bf16.mxu0 %v312
    %464 = vmatmul.mubr.bf16.gmra.mxu0 %v192
    %v465 = vpop.f32.mrf.mxu0
    %v466 = vadd.f32 0.0, %v465
    %v467 = vpop.f32.mrf.mxu0
    %v468 = vpop.f32.mrf.mxu0
    %v469 = vadd.f32 0.0, %v468
    %v470 = vpop.f32.mrf.mxu0
    %471 = vmatprep.mubr.bf16.mxu0 %v315
    %472 = vmatmul.mubr.bf16.gmra.mxu0 %v194
    %v473 = vpop.f32.mrf.mxu0
    %v474 = vadd.f32 0.0, %v473
    %v475 = vpop.f32.mrf.mxu0
    %v476 = vpop.f32.mrf.mxu0
    %v477 = vadd.f32 0.0, %v476
    %v478 = vpop.f32.mrf.mxu0
    %479 = vmatprep.mubr.bf16.mxu0 %v318
    %480 = vmatmul.mubr.bf16.gmra.mxu0 %v196
    %v481 = vpop.f32.mrf.mxu0
    %v482 = vadd.f32 0.0, %v481
    %v483 = vpop.f32.mrf.mxu0
    %v484 = vpop.f32.mrf.mxu0
    %v485 = vadd.f32 0.0, %v484
    %v486 = vpop.f32.mrf.mxu0
    %487 = vdwg.mxu0
    %v488 = vld [vmem:[%s2] sm:$0x1]
    %v490 = vlaneseq
    %v491 = vshrl.u32 %v490, 7
    %v492 = vsub.s32 0, %v491
    %v493 = vrot.slane %v488, %v492
    %v495 = vmul.f32 %v362, %v493
    %v496 = vmul.f32 %v365, %v493
    %v497 = vmul.f32 %v370, %v493
    %v498 = vmul.f32 %v373, %v493
    %v499 = vmul.f32 %v378, %v493
    %v500 = vmul.f32 %v381, %v493
    %v501 = vmul.f32 %v386, %v493
    %v502 = vmul.f32 %v389, %v493
    %v503 = vmul.f32 %v394, %v493
    %v504 = vmul.f32 %v397, %v493
    %v505 = vmul.f32 %v402, %v493
    %v506 = vmul.f32 %v405, %v493
    %v507 = vmul.f32 %v410, %v493
    %v508 = vmul.f32 %v413, %v493
    %v509 = vmul.f32 %v418, %v493
    %v510 = vmul.f32 %v421, %v493
    %v511 = vmul.f32 %v426, %v493
    %v512 = vmul.f32 %v429, %v493
    %v513 = vmul.f32 %v434, %v493
    %v514 = vmul.f32 %v437, %v493
    %v515 = vmul.f32 %v442, %v493
    %v516 = vmul.f32 %v445, %v493
    %v517 = vmul.f32 %v450, %v493
    %v518 = vmul.f32 %v453, %v493
    %v519 = vmul.f32 %v458, %v493
    %v520 = vmul.f32 %v461, %v493
    %v521 = vmul.f32 %v466, %v493
    %v522 = vmul.f32 %v469, %v493
    %v523 = vmul.f32 %v474, %v493
    %v524 = vmul.f32 %v477, %v493
    %v525 = vmul.f32 %v482, %v493
    %v526 = vmul.f32 %v485, %v493
    %v527 = vld [vmem:[%s3] sm:$0x1]
    %v529 = vlaneseq
    %v530 = vshrl.u32 %v529, 7
    %v531 = vsub.s32 0, %v530
    %v532 = vrot.slane %v527, %v531
    %v534 = vadd.f32 %v495, %v532
    %v535 = vadd.f32 %v496, %v532
    %v536 = vadd.f32 %v497, %v532
    %v537 = vadd.f32 %v498, %v532
    %v538 = vadd.f32 %v499, %v532
    %v539 = vadd.f32 %v500, %v532
    %v540 = vadd.f32 %v501, %v532
    %v541 = vadd.f32 %v502, %v532
    %v542 = vadd.f32 %v503, %v532
    %v543 = vadd.f32 %v504, %v532
    %v544 = vadd.f32 %v505, %v532
    %v545 = vadd.f32 %v506, %v532
    %v546 = vadd.f32 %v507, %v532
    %v547 = vadd.f32 %v508, %v532
    %v548 = vadd.f32 %v509, %v532
    %v549 = vadd.f32 %v510, %v532
    %v550 = vadd.f32 %v511, %v532
    %v551 = vadd.f32 %v512, %v532
    %v552 = vadd.f32 %v513, %v532
    %v553 = vadd.f32 %v514, %v532
    %v554 = vadd.f32 %v515, %v532
    %v555 = vadd.f32 %v516, %v532
    %v556 = vadd.f32 %v517, %v532
    %v557 = vadd.f32 %v518, %v532
    %v558 = vadd.f32 %v519, %v532
    %v559 = vadd.f32 %v520, %v532
    %v560 = vadd.f32 %v521, %v532
    %v561 = vadd.f32 %v522, %v532
    %v562 = vadd.f32 %v523, %v532
    %v563 = vadd.f32 %v524, %v532
    %v564 = vadd.f32 %v525, %v532
    %v565 = vadd.f32 %v526, %v532
    %v566 = vmax.f32 %v534, 0.0
    %v567 = vmax.f32 %v535, 0.0
    %v568 = vmax.f32 %v536, 0.0
    %v569 = vmax.f32 %v537, 0.0
    %v570 = vmax.f32 %v538, 0.0
    %v571 = vmax.f32 %v539, 0.0
    %v572 = vmax.f32 %v540, 0.0
    %v573 = vmax.f32 %v541, 0.0
    %v574 = vmax.f32 %v542, 0.0
    %v575 = vmax.f32 %v543, 0.0
    %v576 = vmax.f32 %v544, 0.0
    %v577 = vmax.f32 %v545, 0.0
    %v578 = vmax.f32 %v546, 0.0
    %v579 = vmax.f32 %v547, 0.0
    %v580 = vmax.f32 %v548, 0.0
    %v581 = vmax.f32 %v549, 0.0
    %v582 = vmax.f32 %v550, 0.0
    %v583 = vmax.f32 %v551, 0.0
    %v584 = vmax.f32 %v552, 0.0
    %v585 = vmax.f32 %v553, 0.0
    %v586 = vmax.f32 %v554, 0.0
    %v587 = vmax.f32 %v555, 0.0
    %v588 = vmax.f32 %v556, 0.0
    %v589 = vmax.f32 %v557, 0.0
    %v590 = vmax.f32 %v558, 0.0
    %v591 = vmax.f32 %v559, 0.0
    %v592 = vmax.f32 %v560, 0.0
    %v593 = vmax.f32 %v561, 0.0
    %v594 = vmax.f32 %v562, 0.0
    %v595 = vmax.f32 %v563, 0.0
    %v596 = vmax.f32 %v564, 0.0
    %v597 = vmax.f32 %v565, 0.0
    %vm598 = vcmask 523264
    %599 = vst.msk [vmem:[#allocation2] sm:$0xff] %vm598, %v566
    %600 = vst.msk [vmem:[#allocation2 + $0x8] sm:$0xff] %vm598, %v567
    %601 = vst.msk [vmem:[#allocation2 + $0x10] sm:$0xff] %vm598, %v568
    %602 = vst.msk [vmem:[#allocation2 + $0x18] sm:$0xff] %vm598, %v569
    %603 = vst.msk [vmem:[#allocation2 + $0x20] sm:$0xff] %vm598, %v570
    %604 = vst.msk [vmem:[#allocation2 + $0x28] sm:$0xff] %vm598, %v571
    %605 = vst.msk [vmem:[#allocation2 + $0x30] sm:$0xff] %vm598, %v572
    %606 = vst.msk [vmem:[#allocation2 + $0x38] sm:$0xff] %vm598, %v573
    %607 = vst.msk [vmem:[#allocation2 + $0x40] sm:$0xff] %vm598, %v574
    %608 = vst.msk [vmem:[#allocation2 + $0x48] sm:$0xff] %vm598, %v575
    %609 = vst.msk [vmem:[#allocation2 + $0x50] sm:$0xff] %vm598, %v576
    %610 = vst.msk [vmem:[#allocation2 + $0x58] sm:$0xff] %vm598, %v577
    %611 = vst.msk [vmem:[#allocation2 + $0x60] sm:$0xff] %vm598, %v578
    %612 = vst.msk [vmem:[#allocation2 + $0x68] sm:$0xff] %vm598, %v579
    %613 = vst.msk [vmem:[#allocation2 + $0x70] sm:$0xff] %vm598, %v580
    %614 = vst.msk [vmem:[#allocation2 + $0x78] sm:$0xff] %vm598, %v581
    %615 = vst.msk [vmem:[#allocation2 + $0x80] sm:$0xff] %vm598, %v582
    %616 = vst.msk [vmem:[#allocation2 + $0x88] sm:$0xff] %vm598, %v583
    %617 = vst.msk [vmem:[#allocation2 + $0x90] sm:$0xff] %vm598, %v584
    %618 = vst.msk [vmem:[#allocation2 + $0x98] sm:$0xff] %vm598, %v585
    %619 = vst.msk [vmem:[#allocation2 + $0xa0] sm:$0xff] %vm598, %v586
    %620 = vst.msk [vmem:[#allocation2 + $0xa8] sm:$0xff] %vm598, %v587
    %621 = vst.msk [vmem:[#allocation2 + $0xb0] sm:$0xff] %vm598, %v588
    %622 = vst.msk [vmem:[#allocation2 + $0xb8] sm:$0xff] %vm598, %v589
    %623 = vst.msk [vmem:[#allocation2 + $0xc0] sm:$0xff] %vm598, %v590
    %624 = vst.msk [vmem:[#allocation2 + $0xc8] sm:$0xff] %vm598, %v591
    %625 = vst.msk [vmem:[#allocation2 + $0xd0] sm:$0xff] %vm598, %v592
    %626 = vst.msk [vmem:[#allocation2 + $0xd8] sm:$0xff] %vm598, %v593
    %627 = vst.msk [vmem:[#allocation2 + $0xe0] sm:$0xff] %vm598, %v594
    %628 = vst.msk [vmem:[#allocation2 + $0xe8] sm:$0xff] %vm598, %v595
    %629 = vst.msk [vmem:[#allocation2 + $0xf0] sm:$0xff] %vm598, %v596
    %630 = vst.msk [vmem:[#allocation2 + $0xf8] sm:$0xff] %vm598, %v597
    // Predicated region
    $region18: #{_conv_call.1} parent=1 // pred_check
      _
    $region19: #{_conv_call.1} parent=1 // pred_check_branch
      %632 = sbr.rel (0) target = $region21
    $region20: #{_conv_call.1} parent=1 // pred_region
      %s634 = ssub.s32 4096, 4096
      %635 = vsyncadd [#allocation3], %s634
      %s636 = sshll.u32 [#allocation2], 4
      %s637 = int_to_ptr.vmem [resolvable:$true] %s636
      %642 = dma.vmem_to_hbm [thread:$0]  %s637, 4096, %s4, [#allocation3], 128, 128, 8
    $region21: #{_conv_call.1} parent=1 // pred_fallthru
      _
    // Predicated region
    $region22: #{_conv_call.1} parent=1 // pred_check
      _
    $region23: #{_conv_call.1} parent=1 // pred_check_branch
      %644 = sbr.rel (0) target = $region25
    $region24: #{_conv_call.1} parent=1 // pred_region
      %645 = dma.done [#allocation3], 4096
    $region25: #{_conv_call.1} parent=1 // pred_fallthru
      _
    %646 = vsyncpa [#allocation3], 1

</llo_original>
